<compile_context>
chip_gen: v5e
topology: v5e:2x2
jax: 0.10.0
libtpu: 0.0.40
codegen_flags: <defaults>
</compile_context>

<pallas_src>
import jax
import jax.numpy as jnp
from jax.experimental import pallas as pl
from jax.experimental.pallas import tpu as pltpu

_LANE = 128
_MIN_GRID_STEPS = 8          # keep the double-buffered pipeline full (>=2/TC on v7x)
_SMALL_BYTES = 1 << 20       # below ~1 MiB a tiled pipeline is pure overhead


# ---------------------------------------------------------------------------
# Kernels
# ---------------------------------------------------------------------------

def _copy_kernel(x_ref, o_ref):
    # Straight copy of the current (tile_rows, cols) block.  Lane-dense,
    # sublane-full blocks -> unmasked full-width vector loads/stores.
    o_ref[...] = x_ref[...]


def _dma_copy_kernel(x_hbm, o_hbm, sem):
    # Whole-slab HBM -> HBM DMA; no VMEM staging, no compute.
    cp = pltpu.make_async_copy(x_hbm, o_hbm, sem)
    cp.start()
    cp.wait()


def _dma_copy(x):
    """Fresh-buffer copy of `x` via a single HBM->HBM DMA."""
    return pl.pallas_call(
        _dma_copy_kernel,
        out_shape=jax.ShapeDtypeStruct(x.shape, x.dtype),
        in_specs=[pl.BlockSpec(memory_space=pl.ANY)],
        out_specs=pl.BlockSpec(memory_space=pl.ANY),
        scratch_shapes=[pltpu.SemaphoreType.DMA(())],
    )(x)


# ---------------------------------------------------------------------------
# Tiling heuristics
# ---------------------------------------------------------------------------

def _sublane_quantum(itemsize: int) -> int:
    # f32 -> 8 sublanes per vreg; bf16 -> 16; int8 -> 32.
    return max(8, 32 // max(1, itemsize))


def _chip_params():
    """(tile_bytes, vmem_cap_bytes) tuned per TPU generation."""
    try:
        kind = jax.devices()[0].device_kind.lower()
    except Exception:  # pragma: no cover - defensive
        kind = ""
    if "v7" in kind:
        # 3.2 TB/s HBM: big tiles amortize the ~0.35 us/step overhead.
        return 8 << 20, 40 << 20
    if "v6" in kind:
        # Measured: ~85% roofline at 1 MiB, ~86% at 4 MiB -> 2 MiB is enough.
        return 2 << 20, 32 << 20
    if "v5" in kind:
        # Stay inside the 16 MiB scoped-VMEM default (4*2 + 4 = 12 MiB).
        return 2 << 20, 16 << 20
    return 2 << 20, 32 << 20


def _pick_cols(total: int, max_cols: int = 2048) -> int:
    """Largest power-of-two multiple of 128 (<= max_cols) dividing `total`."""
    cols = _LANE
    c = _LANE * 2
    while c <= max_cols and total % c == 0:
        cols = c
        c *= 2
    return cols


def _pick_tile_rows(rows: int, cols: int, itemsize: int,
                    tile_bytes: int, sub: int) -> int:
    """Largest multiple of `sub` fitting `tile_bytes` while leaving at least
    _MIN_GRID_STEPS grid steps (ragged last block handled by pl.cdiv)."""
    cap_bytes = max(sub, (tile_bytes // (cols * itemsize)) // sub * sub)
    cap_steps = max(sub, (rows // _MIN_GRID_STEPS) // sub * sub)
    return max(sub, min(cap_bytes, cap_steps))


# ---------------------------------------------------------------------------
# Forward
# ---------------------------------------------------------------------------

def reshape_forward(x, target_shape, *, materialize=True, tile_bytes=None):
    """Pallas equivalent of Reshape(*target_shape)(x) == x.view((B,) + shape)."""
    b = x.shape[0]
    numel = 1
    for d in x.shape[1:]:
        numel *= d
    tgt_numel = 1
    for d in target_shape:
        tgt_numel *= d
    assert tgt_numel == numel, "target shape incompatible with input size"

    out_shape = (b,) + tuple(target_shape)

    # Fast path: reshape is metadata-only; no HBM traffic, no kernel launch.
    if not materialize:
        return x.reshape(out_shape)

    itemsize = jnp.dtype(x.dtype).itemsize
    sub = _sublane_quantum(itemsize)
    total = b * numel
    total_bytes = total * itemsize

    chip_tile_bytes, vmem_cap = _chip_params()
    if tile_bytes is None:
        tile_bytes = chip_tile_bytes

    # Small or non-lane-dense sizes: single whole-slab HBM->HBM DMA.  Still a
    # fresh buffer (never a view), and launch overhead dominates anyway.
    if total_bytes < _SMALL_BYTES or total % _LANE != 0:
        return _dma_copy(x.reshape(out_shape))

    # Re-tile the flat slab to a lane-dense (rows, cols) layout.
    cols = _pick_cols(total)
    rows = total // cols
    tile_rows = _pick_tile_rows(rows, cols, itemsize, tile_bytes, sub)
    grid = (pl.cdiv(rows, tile_rows),)      # ragged last block is fine (masked)

    tile_nbytes = tile_rows * cols * itemsize
    # 2 double-buffered input blocks + 2 output blocks + headroom, capped per chip.
    vmem_limit = int(min(max(4 * tile_nbytes + (4 << 20), 16 << 20), vmem_cap))

    x_flat = x.reshape(rows, cols)          # metadata-only re-tiling

    # TODO(synk): if an xprof trace on v7x shows exposed DMA, try
    # pipeline_mode=pl.Buffered(3) on the in/out specs (watch VMEM budget).
    out_flat = pl.pallas_call(
        _copy_kernel,
        out_shape=jax.ShapeDtypeStruct((rows, cols), x.dtype),
        grid_spec=pltpu.PrefetchScalarGridSpec(
            num_scalar_prefetch=0,
            grid=grid,
            in_specs=[pl.BlockSpec((tile_rows, cols), lambda i: (i, 0))],
            out_specs=pl.BlockSpec((tile_rows, cols), lambda i: (i, 0)),
        ),
        compiler_params=pltpu.CompilerParams(
            # "parallel" shards across the 2 TCs on v7x; on v5e/v6e (1 TC)
            # it is a no-op -- the >=8-step grid exists for pipeline overlap.
            dimension_semantics=("parallel",),
            vmem_limit_bytes=vmem_limit,
        ),
    )(x_flat)

    return out_flat.reshape(out_shape)


# ---------------------------------------------------------------------------
# Demo / checks
# ---------------------------------------------------------------------------

if __name__ == "__main__":
    key = jax.random.PRNGKey(0)

    # 1) Mirrors the module spec: Reshape(16, 64) on x of shape (2, 4, 16, 16).
    #    8 KiB total -> small-size escape hatch -> whole-slab HBM->HBM DMA.
    x = jax.random.normal(key, (2, 4, 16, 16), dtype=jnp.float32)
    y = jax.block_until_ready(reshape_forward(x, (16, 64)))
    y_ref = x.reshape((x.shape[0], 16, 64))
    assert y.shape == (2, 16, 64) and y.dtype == x.dtype
    assert bool(jnp.array_equal(y, y_ref))

    # Recommended production path: metadata-only reshape (no copy at all).
    y_fast = jax.block_until_ready(reshape_forward(x, (16, 64), materialize=False))
    assert bool(jnp.array_equal(y_fast, y_ref))

    # 2) Larger, evenly-divisible size -> tiled VMEM copy, >= 8 grid steps.
    k2 = jax.random.fold_in(key, 1)
    x2 = jax.random.normal(k2, (2, 8, 128, 128), dtype=jnp.float32)
    y2 = jax.block_until_ready(reshape_forward(x2, (128, 1024)))
    assert bool(jnp.array_equal(y2, x2.reshape((2, 128, 1024))))

    # 3) Awkward factorization (rows = 2187 = 3^7) -> ragged last block via cdiv.
    k3 = jax.random.fold_in(key, 2)
    x3 = jax.random.normal(k3, (2, 3, 216, 216), dtype=jnp.float32)
    y3 = jax.block_until_ready(reshape_forward(x3, (216, 648)))
    assert bool(jnp.array_equal(y3, x3.reshape((2, 216, 648))))

    print("KERNEL_OK")
</pallas_src>

<mosaic_0001>
module attributes {stable_mosaic.version = 11 : i64} {
  func.func @_dma_copy_kernel(%arg0: memref<2x16x64xf32, #tpu.memory_space<any>>, %arg1: memref<2x16x64xf32, #tpu.memory_space<any>>, %arg2: memref<!tpu.dma_semaphore, #tpu.memory_space<semaphore_mem>>) attributes {dimension_semantics = [], scalar_prefetch = 0 : i64, scratch_operands = 1 : i64, tpu.core_type = #tpu.core_type<tc>} {
    tpu.enqueue_dma source(%arg0 : memref<2x16x64xf32, #tpu.memory_space<any>>) target(%arg1 : memref<2x16x64xf32, #tpu.memory_space<any>>) target_semaphore(%arg2 : memref<!tpu.dma_semaphore, #tpu.memory_space<semaphore_mem>>)
    tpu.wait_dma2 semaphore(%arg2 : memref<!tpu.dma_semaphore, #tpu.memory_space<semaphore_mem>>) src(%arg0 : memref<2x16x64xf32, #tpu.memory_space<any>>) dst(%arg1 : memref<2x16x64xf32, #tpu.memory_space<any>>)
    return
  }
}

</mosaic_0001>

<llo_original>
// kernel: tpu_custom_call.1
$region0: #{tpu_custom_call.1}
  #allocation0 [shape = 'u32[]', space=smem, size = 0x4, offset = 0x4, fixed_abs, tag = 'smem constant byte address 0x4 - core index']
  #allocation1 [shape = 'u32[72,128]{1,0:T(1,128)}', space=vmem, size = 0x9000, scoped, tag = 'internal scratch']
  #allocation2 [shape = 's32[1]{0}', space=sflag, size = 0x4, scoped, tag = 'scratch operand']
  #allocation3 [shape = 's32[]', space=sflag, size = 0x4, offset = 0, fixed_abs, tag = 'sflag constant byte address 0x0 - dummy sync flag']
  #allocation4 [shape = 'u32[0]{0}', space=smem, size = 0, offset = 0, fixed_abs, tag = 'smem constant byte address 0x0 - null']
  %s0 = inlined_call_operand.hbm [shape: f32[2,16,64], index: 0, kind: input, shape index: {}]
  %s1 = inlined_call_operand.hbm [shape: f32[2,16,64], index: 1, kind: output, shape index: {}]
  %s2 = sld [smem:[#allocation0]]
  $region2: #{tpu_custom_call.1} parent=0
    _
  %s4 = ssub.s32 1, %s2
  %s5 = scalar_select 0, %s4, %s2
  %s7 = sshll.u32 1, 14
  %s8 = sxor.u32 4294967295, %s7
  %s10 = sshll.u32 %s0, 4
  %s11 = int_to_ptr.hbm [resolvable:$true] %s10
  %s12 = sshll.u32 %s1, 4
  %s13 = int_to_ptr.hbm [resolvable:$true] %s12
  %16 = dma.general %s11, 512, %s13, [#allocation2], [#allocation3], [#allocation4], 0, 0
  %s17 = smul.u32 2, 16
  %s18 = smul.u32 %s17, 1
  %s19 = sshll.u32 %s18, 4
  %20 = dma.done [#allocation2], %s19
  %21 = vsyncmov [#allocation2]
  %s22 = vpop.sfrf %21
  %p23 = scmp.eq.s32.totalorder %s22, 0
  %p24 = pneg %p23
  %26 = shalt.err (%p24)

</llo_original>
